<compile_context>
chip_gen: v5e
topology: v5e:2x2
jax: 0.10.0
libtpu: 0.0.40
codegen_flags: <defaults>
</compile_context>

<pallas_src>
import jax
import jax.numpy as jnp
from jax.experimental import pallas as pl
from jax.experimental.pallas import tpu as pltpu

LANE = 128
SUBLANE = 8


def _round_up(n, m):
    return ((n + m - 1) // m) * m


def deepnn_kernel(x_ref, w1_ref, b1_ref, w2_ref, b2_ref, w3_ref, b3_ref, o_ref):
    # Cast f32 activations to bf16 in-kernel (free under MXU/DMA slack).
    x = x_ref[...].astype(jnp.bfloat16)

    # Layer 1: Linear + ReLU (+ Dropout == identity in eval mode)
    h = jnp.dot(x, w1_ref[...], preferred_element_type=jnp.float32)
    h = jnp.maximum(h + b1_ref[...], 0.0)          # b1 is (1, H1p) -> broadcast

    # Layer 2: Linear + ReLU (+ Dropout == identity in eval mode)
    h = jnp.dot(h.astype(jnp.bfloat16), w2_ref[...],
                preferred_element_type=jnp.float32)
    h = jnp.maximum(h + b2_ref[...], 0.0)

    # Output layer: Linear + Sigmoid.  Output width is padded only to a sublane
    # multiple (8), keeping the padded HBM writeback small.
    z = jnp.dot(h.astype(jnp.bfloat16), w3_ref[...],
                preferred_element_type=jnp.float32)
    o_ref[...] = jax.nn.sigmoid(z + b3_ref[...])


def prepare_params(params):
    """One-time parameter prep (call ONCE, outside the per-call path).

    Hidden widths are zero-padded to a lane multiple (128) -- numerically exact
    because relu(0)=0 contributes nothing downstream.  The output width is padded
    only to a sublane multiple (8); padded columns (sigmoid(0)=0.5) are sliced off
    in the wrapper.  Weights are cast to bf16 (MXU dtype), biases stay f32.
    Returns (prepared_params, output_dim).
    """
    w1, b1, w2, b2, w3, b3 = params
    H1, H2, D_out = w1.shape[1], w2.shape[1], w3.shape[1]
    H1p = _round_up(H1, LANE)
    H2p = _round_up(H2, LANE)
    Dop = _round_up(max(D_out, SUBLANE), SUBLANE)

    f32, bf16 = jnp.float32, jnp.bfloat16
    prepared = (
        jnp.pad(w1, ((0, 0), (0, H1p - H1))).astype(bf16),
        jnp.pad(b1, ((0, 0), (0, H1p - H1))).astype(f32),
        jnp.pad(w2, ((0, H1p - H1), (0, H2p - H2))).astype(bf16),
        jnp.pad(b2, ((0, 0), (0, H2p - H2))).astype(f32),
        jnp.pad(w3, ((0, H2p - H2), (0, Dop - D_out))).astype(bf16),
        jnp.pad(b3, ((0, 0), (0, Dop - D_out))).astype(f32),
    )
    return prepared, D_out


def deepnn_forward(x, prepared_params, output_dim, *, batch_tile=None):
    """Fused MLP forward.  x: [B, D_in] float32.  Returns [B, output_dim] float32."""
    w1p, b1p, w2p, b2p, w3p, b3p = prepared_params
    B, D_in = x.shape
    H1p, H2p, Dop = w1p.shape[1], w2p.shape[1], w3p.shape[1]

    weight_bytes = ((D_in * H1p + H1p * H2p + H2p * Dop) * 2
                    + (H1p + H2p + Dop) * 4)

    def tile_vmem(t):
        # f32 x/out tiles (x2 for double buffering when tiled), resident weights,
        # live f32 intermediates.
        return (2 * t * D_in * 4 + 2 * t * Dop * 4 + weight_bytes
                + 3 * t * max(H1p, H2p) * 4)

    if batch_tile is None:
        # Prefer a SINGLE grid step: on single-TC v5e/v6e the grid is a serial
        # loop, so extra steps only add ~0.35us/step overhead.  Tile the batch
        # only when the full tile would not fit comfortably in VMEM.
        if tile_vmem(B) <= (12 << 20):
            batch_tile = B
        else:
            batch_tile = B
            for t in (2048, 1024, 512, 256, 128, 64, 32, 16):
                if B % t == 0 and tile_vmem(t) <= (12 << 20):
                    batch_tile = t
                    break
    assert B % batch_tile == 0, "batch_tile must divide batch"
    # bf16 intermediates pack (16,128) tiles -> keep tiled batch a multiple of 16.
    assert batch_tile == B or batch_tile % 16 == 0

    n_steps = B // batch_tile
    grid = (n_steps,)

    # Grid-invariant weights/biases (constant index_map) stay resident across grid
    # steps; single-buffer them when the batch axis is actually tiled.
    w_mode = dict(pipeline_mode=pl.Buffered(1)) if n_steps > 1 else {}
    in_specs = [
        pl.BlockSpec((batch_tile, D_in), lambda i: (i, 0)),            # x (f32)
        pl.BlockSpec((D_in, H1p), lambda i: (0, 0), **w_mode),         # w1 (bf16)
        pl.BlockSpec((1, H1p), lambda i: (0, 0), **w_mode),            # b1 (f32)
        pl.BlockSpec((H1p, H2p), lambda i: (0, 0), **w_mode),          # w2 (bf16)
        pl.BlockSpec((1, H2p), lambda i: (0, 0), **w_mode),            # b2 (f32)
        pl.BlockSpec((H2p, Dop), lambda i: (0, 0), **w_mode),          # w3 (bf16)
        pl.BlockSpec((1, Dop), lambda i: (0, 0), **w_mode),            # b3 (f32)
    ]
    out_specs = pl.BlockSpec((batch_tile, Dop), lambda i: (i, 0))

    cost = pl.CostEstimate(
        flops=2 * B * (D_in * H1p + H1p * H2p + H2p * Dop),
        transcendentals=B * Dop,
        bytes_accessed=B * D_in * 4 + B * Dop * 4 + weight_bytes,
    )

    # NOTE: on v7x, a 2-step batch grid with pltpu.CORE_PARALLEL would shard across
    # the two TensorCores; at these latency-bound shapes a single step is better.
    dims = ("arbitrary",) if n_steps == 1 else ("parallel",)
    cp_kwargs = dict(dimension_semantics=dims)
    vmem_est = tile_vmem(batch_tile)
    if vmem_est > (16 << 20):
        # Raise the scoped VMEM limit for large tiles, but cap at 48 MiB so we
        # leave headroom under v7x's 64 MiB/TC physical VMEM.
        cp_kwargs["vmem_limit_bytes"] = min(int(1.5 * vmem_est), 48 << 20)

    out_padded = pl.pallas_call(
        deepnn_kernel,
        out_shape=jax.ShapeDtypeStruct((B, Dop), jnp.float32),
        grid=grid,
        in_specs=in_specs,
        out_specs=out_specs,
        compiler_params=pltpu.CompilerParams(**cp_kwargs),
        cost_estimate=cost,
    )(x, w1p, b1p, w2p, b2p, w3p, b3p)

    return out_padded[:, :output_dim]


def init_params(key, input_dim, hidden_dims, output_dim):
    """Deterministic parameter init (uniform fan-in, like torch.nn.Linear)."""
    dims = [input_dim] + list(hidden_dims) + [output_dim]
    params = []
    for d_in, d_out in zip(dims[:-1], dims[1:]):
        key, kw, kb = jax.random.split(key, 3)
        bound = 1.0 / jnp.sqrt(d_in)
        w = jax.random.uniform(kw, (d_in, d_out), jnp.float32, -bound, bound)
        b = jax.random.uniform(kb, (1, d_out), jnp.float32, -bound, bound)
        params.extend([w, b])
    return tuple(params)


def reference_forward(x, params):
    w1, b1, w2, b2, w3, b3 = params
    h = jnp.maximum(x @ w1 + b1, 0.0)
    h = jnp.maximum(h @ w2 + b2, 0.0)
    return jax.nn.sigmoid(h @ w3 + b3)


if __name__ == "__main__":
    # DeepNN(input_dim=32, hidden_dims=[64, 32], output_dim=4, dropout=0.4) in eval mode.
    batch, input_dim, hidden_dims, output_dim = 256, 32, (64, 32), 4

    key = jax.random.PRNGKey(0)
    key, kx = jax.random.split(key)
    x = jax.random.normal(kx, (batch, input_dim), dtype=jnp.float32)
    params = init_params(key, input_dim, hidden_dims, output_dim)

    # One-time parameter prep (padding + bf16 cast), hoisted out of the call path.
    prepared, d_out = prepare_params(params)
    prepared = jax.block_until_ready(prepared)

    out = deepnn_forward(x, prepared, d_out)
    out = jax.block_until_ready(out)

    ref = reference_forward(x, params)
    assert out.shape == (batch, output_dim)
    # bf16 weights / activations (f32 accumulation) -> loosened tolerance vs f32 ref.
    assert jnp.allclose(out, ref, atol=2e-2, rtol=2e-2), float(jnp.max(jnp.abs(out - ref)))

    print("KERNEL_OK")
</pallas_src>

<mosaic_0001>
module attributes {stable_mosaic.version = 11 : i64} {
  func.func @deepnn_kernel(%arg0: i32, %arg1: memref<256x32xf32, #tpu.memory_space<vmem>>, %arg2: memref<32x128xbf16, #tpu.memory_space<vmem>>, %arg3: memref<1x128xf32, #tpu.memory_space<vmem>>, %arg4: memref<128x128xbf16, #tpu.memory_space<vmem>>, %arg5: memref<1x128xf32, #tpu.memory_space<vmem>>, %arg6: memref<128x8xbf16, #tpu.memory_space<vmem>>, %arg7: memref<1x8xf32, #tpu.memory_space<vmem>>, %arg8: memref<256x8xf32, #tpu.memory_space<vmem>>) attributes {dimension_semantics = [#tpu.dimension_semantics<arbitrary>], iteration_bounds = array<i64: 1>, scalar_prefetch = 0 : i64, scratch_operands = 0 : i64, tpu.core_type = #tpu.core_type<tc>, window_params = [{transform_indices = @transform_0, window_bounds = array<i64: 256, 32>}, {pipeline_mode = #tpu.pipeline_mode<synchronous>, transform_indices = @transform_1, window_bounds = array<i64: 32, 128>}, {pipeline_mode = #tpu.pipeline_mode<synchronous>, transform_indices = @transform_2, window_bounds = array<i64: 1, 128>}, {pipeline_mode = #tpu.pipeline_mode<synchronous>, transform_indices = @transform_3, window_bounds = array<i64: 128, 128>}, {pipeline_mode = #tpu.pipeline_mode<synchronous>, transform_indices = @transform_4, window_bounds = array<i64: 1, 128>}, {pipeline_mode = #tpu.pipeline_mode<synchronous>, transform_indices = @transform_5, window_bounds = array<i64: 128, 8>}, {pipeline_mode = #tpu.pipeline_mode<synchronous>, transform_indices = @transform_6, window_bounds = array<i64: 1, 8>}, {transform_indices = @transform_7, window_bounds = array<i64: 256, 8>}]} {
    %c0 = arith.constant 0 : index
    %c0_0 = arith.constant 0 : index
    %0 = vector.load %arg1[%c0, %c0_0] : memref<256x32xf32, #tpu.memory_space<vmem>>, vector<256x32xf32>
    %1 = arith.truncf %0 : vector<256x32xf32> to vector<256x32xbf16>
    %c0_1 = arith.constant 0 : index
    %c0_2 = arith.constant 0 : index
    %2 = vector.load %arg2[%c0_1, %c0_2] : memref<32x128xbf16, #tpu.memory_space<vmem>>, vector<32x128xbf16>
    %cst = arith.constant dense<0.000000e+00> : vector<256x128xf32>
    %3 = tpu.matmul %1, %2, %cst {dimension_numbers = #tpu.dot_dimension_numbers<[1], [0], [0], [1], [0, 0, 1, 1], [], []>} : vector<256x32xbf16>, vector<32x128xbf16>, vector<256x128xf32> -> vector<256x128xf32>
    %c0_3 = arith.constant 0 : index
    %c0_4 = arith.constant 0 : index
    %4 = vector.load %arg3[%c0_3, %c0_4] : memref<1x128xf32, #tpu.memory_space<vmem>>, vector<1x128xf32>
    %5 = vector.broadcast %4 : vector<1x128xf32> to vector<256x128xf32>
    %6 = arith.addf %3, %5 : vector<256x128xf32>
    %cst_5 = arith.constant 0.000000e+00 : f32
    %7 = vector.broadcast %cst_5 : f32 to vector<256x128xf32>
    %8 = arith.maximumf %6, %7 : vector<256x128xf32>
    %9 = arith.truncf %8 : vector<256x128xf32> to vector<256x128xbf16>
    %c0_6 = arith.constant 0 : index
    %c0_7 = arith.constant 0 : index
    %10 = vector.load %arg4[%c0_6, %c0_7] : memref<128x128xbf16, #tpu.memory_space<vmem>>, vector<128x128xbf16>
    %cst_8 = arith.constant dense<0.000000e+00> : vector<256x128xf32>
    %11 = tpu.matmul %9, %10, %cst_8 {dimension_numbers = #tpu.dot_dimension_numbers<[1], [0], [0], [1], [0, 0, 1, 1], [], []>} : vector<256x128xbf16>, vector<128x128xbf16>, vector<256x128xf32> -> vector<256x128xf32>
    %c0_9 = arith.constant 0 : index
    %c0_10 = arith.constant 0 : index
    %12 = vector.load %arg5[%c0_9, %c0_10] : memref<1x128xf32, #tpu.memory_space<vmem>>, vector<1x128xf32>
    %13 = vector.broadcast %12 : vector<1x128xf32> to vector<256x128xf32>
    %14 = arith.addf %11, %13 : vector<256x128xf32>
    %cst_11 = arith.constant 0.000000e+00 : f32
    %15 = vector.broadcast %cst_11 : f32 to vector<256x128xf32>
    %16 = arith.maximumf %14, %15 : vector<256x128xf32>
    %17 = arith.truncf %16 : vector<256x128xf32> to vector<256x128xbf16>
    %c0_12 = arith.constant 0 : index
    %c0_13 = arith.constant 0 : index
    %18 = vector.load %arg6[%c0_12, %c0_13] : memref<128x8xbf16, #tpu.memory_space<vmem>>, vector<128x8xbf16>
    %cst_14 = arith.constant dense<0.000000e+00> : vector<256x8xf32>
    %19 = tpu.matmul %17, %18, %cst_14 {dimension_numbers = #tpu.dot_dimension_numbers<[1], [0], [0], [1], [0, 0, 1, 1], [], []>} : vector<256x128xbf16>, vector<128x8xbf16>, vector<256x8xf32> -> vector<256x8xf32>
    %c0_15 = arith.constant 0 : index
    %c0_16 = arith.constant 0 : index
    %20 = vector.load %arg7[%c0_15, %c0_16] : memref<1x8xf32, #tpu.memory_space<vmem>>, vector<1x8xf32>
    %21 = vector.broadcast %20 : vector<1x8xf32> to vector<256x8xf32>
    %22 = arith.addf %19, %21 : vector<256x8xf32>
    %23 = arith.negf %22 : vector<256x8xf32>
    %24 = math.exp %23 : vector<256x8xf32>
    %cst_17 = arith.constant 1.000000e+00 : f32
    %25 = vector.broadcast %cst_17 : f32 to vector<256x8xf32>
    %26 = arith.addf %25, %24 : vector<256x8xf32>
    %27 = arith.divf %25, %26 : vector<256x8xf32>
    %c0_18 = arith.constant 0 : index
    %c0_19 = arith.constant 0 : index
    %28 = vector.load %arg8[%c0_18, %c0_19] : memref<256x8xf32, #tpu.memory_space<vmem>>, vector<256x8xf32>
    tpu.vector_store %arg8[%c0_18, %c0_19], %27 {strides = array<i32>} : memref<256x8xf32, #tpu.memory_space<vmem>>, vector<256x8xf32>,
    return
  }
  func.func @transform_0(%arg0: i32) -> (i32, i32) {
    %c0_i32 = arith.constant 0 : i32
    %c0_i32_0 = arith.constant 0 : i32
    return %arg0, %c0_i32 : i32, i32
  }
  func.func @transform_1(%arg0: i32) -> (i32, i32) {
    %c0_i32 = arith.constant 0 : i32
    %c0_i32_0 = arith.constant 0 : i32
    %c0_i32_1 = arith.constant 0 : i32
    return %c0_i32, %c0_i32_0 : i32, i32
  }
  func.func @transform_2(%arg0: i32) -> (i32, i32) {
    %c0_i32 = arith.constant 0 : i32
    %c0_i32_0 = arith.constant 0 : i32
    %c0_i32_1 = arith.constant 0 : i32
    return %c0_i32, %c0_i32_0 : i32, i32
  }
  func.func @transform_3(%arg0: i32) -> (i32, i32) {
    %c0_i32 = arith.constant 0 : i32
    %c0_i32_0 = arith.constant 0 : i32
    %c0_i32_1 = arith.constant 0 : i32
    return %c0_i32, %c0_i32_0 : i32, i32
  }
  func.func @transform_4(%arg0: i32) -> (i32, i32) {
    %c0_i32 = arith.constant 0 : i32
    %c0_i32_0 = arith.constant 0 : i32
    %c0_i32_1 = arith.constant 0 : i32
    return %c0_i32, %c0_i32_0 : i32, i32
  }
  func.func @transform_5(%arg0: i32) -> (i32, i32) {
    %c0_i32 = arith.constant 0 : i32
    %c0_i32_0 = arith.constant 0 : i32
    %c0_i32_1 = arith.constant 0 : i32
    return %c0_i32, %c0_i32_0 : i32, i32
  }
  func.func @transform_6(%arg0: i32) -> (i32, i32) {
    %c0_i32 = arith.constant 0 : i32
    %c0_i32_0 = arith.constant 0 : i32
    %c0_i32_1 = arith.constant 0 : i32
    return %c0_i32, %c0_i32_0 : i32, i32
  }
  func.func @transform_7(%arg0: i32) -> (i32, i32) {
    %c0_i32 = arith.constant 0 : i32
    %c0_i32_0 = arith.constant 0 : i32
    return %arg0, %c0_i32 : i32, i32
  }
}

</mosaic_0001>

<llo_original>
// kernel: tpu_custom_call.1
$region0: #{tpu_custom_call.1}
  #allocation0 [shape = 'u32[]', space=smem, size = 0x4, offset = 0x4, fixed_abs, tag = 'smem constant byte address 0x4 - core index']
  #allocation1 [shape = 'u32[72,128]{1,0:T(1,128)}', space=vmem, size = 0x9000, scoped, tag = 'internal scratch']
  %s0 = inlined_call_operand.vmem [shape: f32[256,32], index: 0, kind: input, shape index: {}]
  %s1 = inlined_call_operand.vmem [shape: bf16[32,128], index: 1, kind: input, shape index: {}]
  %s2 = inlined_call_operand.vmem [shape: f32[1,128], index: 2, kind: input, shape index: {}]
  %s3 = inlined_call_operand.vmem [shape: bf16[128,128], index: 3, kind: input, shape index: {}]
  %s4 = inlined_call_operand.vmem [shape: f32[1,128], index: 4, kind: input, shape index: {}]
  %s5 = inlined_call_operand.vmem [shape: bf16[128,8], index: 5, kind: input, shape index: {}]
  %s6 = inlined_call_operand.vmem [shape: f32[1,8], index: 6, kind: input, shape index: {}]
  %s7 = inlined_call_operand.vmem [shape: f32[256,8], index: 7, kind: output, shape index: {}]
  %s8 = sld [smem:[#allocation0]]
  $region38: #{tpu_custom_call.1} parent=0
    _
  %s10 = ssub.s32 1, %s8
  %s11 = scalar_select 0, %s10, %s8
  // Predicated region
  $region2: #{tpu_custom_call.1} parent=0 // pred_check
    _
  $region3: #{tpu_custom_call.1} parent=0 // pred_check_branch
    %13 = sbr.rel (0) target = $region5
  $region4: #{tpu_custom_call.1} parent=0 // pred_region
    _
  $region5: #{tpu_custom_call.1} parent=0 // pred_fallthru
    _
  // Predicated region
  $region6: #{tpu_custom_call.1} parent=0 // pred_check
    _
  $region7: #{tpu_custom_call.1} parent=0 // pred_check_branch
    %15 = sbr.rel (0) target = $region9
  $region8: #{tpu_custom_call.1} parent=0 // pred_region
    _
  $region9: #{tpu_custom_call.1} parent=0 // pred_fallthru
    _
  // Predicated region
  $region10: #{tpu_custom_call.1} parent=0 // pred_check
    _
  $region11: #{tpu_custom_call.1} parent=0 // pred_check_branch
    %17 = sbr.rel (0) target = $region13
  $region12: #{tpu_custom_call.1} parent=0 // pred_region
    _
  $region13: #{tpu_custom_call.1} parent=0 // pred_fallthru
    _
  // Predicated region
  $region14: #{tpu_custom_call.1} parent=0 // pred_check
    _
  $region15: #{tpu_custom_call.1} parent=0 // pred_check_branch
    %19 = sbr.rel (0) target = $region17
  $region16: #{tpu_custom_call.1} parent=0 // pred_region
    _
  $region17: #{tpu_custom_call.1} parent=0 // pred_fallthru
    _
  // Predicated region
  $region18: #{tpu_custom_call.1} parent=0 // pred_check
    _
  $region19: #{tpu_custom_call.1} parent=0 // pred_check_branch
    %21 = sbr.rel (0) target = $region21
  $region20: #{tpu_custom_call.1} parent=0 // pred_region
    _
  $region21: #{tpu_custom_call.1} parent=0 // pred_fallthru
    _
  // Predicated region
  $region22: #{tpu_custom_call.1} parent=0 // pred_check
    _
  $region23: #{tpu_custom_call.1} parent=0 // pred_check_branch
    %23 = sbr.rel (0) target = $region25
  $region24: #{tpu_custom_call.1} parent=0 // pred_region
    _
  $region25: #{tpu_custom_call.1} parent=0 // pred_fallthru
    _
  // Predicated region
  $region26: #{tpu_custom_call.1} parent=0 // pred_check
    _
  $region27: #{tpu_custom_call.1} parent=0 // pred_check_branch
    %25 = sbr.rel (0) target = $region29
  $region28: #{tpu_custom_call.1} parent=0 // pred_region
    _
  $region29: #{tpu_custom_call.1} parent=0 // pred_fallthru
    _
  %v27 = vld [vmem:[%s0] sm:$0xff]
  %v28 = vld [vmem:[%s0 + $0x8] sm:$0xff]
  %v29 = vld [vmem:[%s0 + $0x10] sm:$0xff]
  %v30 = vld [vmem:[%s0 + $0x18] sm:$0xff]
  %v31 = vld [vmem:[%s0 + $0x20] sm:$0xff]
  %v32 = vld [vmem:[%s0 + $0x28] sm:$0xff]
  %v33 = vld [vmem:[%s0 + $0x30] sm:$0xff]
  %v34 = vld [vmem:[%s0 + $0x38] sm:$0xff]
  %v35 = vld [vmem:[%s0 + $0x40] sm:$0xff]
  %v36 = vld [vmem:[%s0 + $0x48] sm:$0xff]
  %v37 = vld [vmem:[%s0 + $0x50] sm:$0xff]
  %v38 = vld [vmem:[%s0 + $0x58] sm:$0xff]
  %v39 = vld [vmem:[%s0 + $0x60] sm:$0xff]
  %v40 = vld [vmem:[%s0 + $0x68] sm:$0xff]
  %v41 = vld [vmem:[%s0 + $0x70] sm:$0xff]
  %v42 = vld [vmem:[%s0 + $0x78] sm:$0xff]
  %v43 = vld [vmem:[%s0 + $0x80] sm:$0xff]
  %v44 = vld [vmem:[%s0 + $0x88] sm:$0xff]
  %v45 = vld [vmem:[%s0 + $0x90] sm:$0xff]
  %v46 = vld [vmem:[%s0 + $0x98] sm:$0xff]
  %v47 = vld [vmem:[%s0 + $0xa0] sm:$0xff]
  %v48 = vld [vmem:[%s0 + $0xa8] sm:$0xff]
  %v49 = vld [vmem:[%s0 + $0xb0] sm:$0xff]
  %v50 = vld [vmem:[%s0 + $0xb8] sm:$0xff]
  %v51 = vld [vmem:[%s0 + $0xc0] sm:$0xff]
  %v52 = vld [vmem:[%s0 + $0xc8] sm:$0xff]
  %v53 = vld [vmem:[%s0 + $0xd0] sm:$0xff]
  %v54 = vld [vmem:[%s0 + $0xd8] sm:$0xff]
  %v55 = vld [vmem:[%s0 + $0xe0] sm:$0xff]
  %v56 = vld [vmem:[%s0 + $0xe8] sm:$0xff]
  %v57 = vld [vmem:[%s0 + $0xf0] sm:$0xff]
  %v58 = vld [vmem:[%s0 + $0xf8] sm:$0xff]
  %v59 = vpack.c.bf16 %v28, %v27
  %v60 = vpack.c.bf16 %v30, %v29
  %v61 = vpack.c.bf16 %v32, %v31
  %v62 = vpack.c.bf16 %v34, %v33
  %v63 = vpack.c.bf16 %v36, %v35
  %v64 = vpack.c.bf16 %v38, %v37
  %v65 = vpack.c.bf16 %v40, %v39
  %v66 = vpack.c.bf16 %v42, %v41
  %v67 = vpack.c.bf16 %v44, %v43
  %v68 = vpack.c.bf16 %v46, %v45
  %v69 = vpack.c.bf16 %v48, %v47
  %v70 = vpack.c.bf16 %v50, %v49
  %v71 = vpack.c.bf16 %v52, %v51
  %v72 = vpack.c.bf16 %v54, %v53
  %v73 = vpack.c.bf16 %v56, %v55
  %v74 = vpack.c.bf16 %v58, %v57
  %v75 = vld [vmem:[%s1] sm:$0xf]
  %v76 = vld [vmem:[%s1 + $0x4] sm:$0xf]
  %v77 = vld [vmem:[%s1 + $0x8] sm:$0xf]
  %v78 = vld [vmem:[%s1 + $0xc] sm:$0xf]
  %v79 = vld [vmem:[%s2] sm:$0x1]
  %v81 = vperm.slane %v79, 0
  %v87 = vunpack.c.l.b16 %v75
  %v88 = vunpack.c.l.b16 %v76
  %v89 = vunpack.c.l.b16 %v77
  %v90 = vunpack.c.l.b16 %v78
  %v91 = vpack.c.b16 %v88, %v87
  %v92 = vpack.c.b16 %v90, %v89
  %vm95 = vcmask 261120
  %v97 = vsel %vm95, %v59, 0
  %v100 = vsel %vm95, %v60, 0
  %v103 = vsel %vm95, %v61, 0
  %v106 = vsel %vm95, %v62, 0
  %v109 = vsel %vm95, %v63, 0
  %v112 = vsel %vm95, %v64, 0
  %v115 = vsel %vm95, %v65, 0
  %v118 = vsel %vm95, %v66, 0
  %v121 = vsel %vm95, %v67, 0
  %v124 = vsel %vm95, %v68, 0
  %v127 = vsel %vm95, %v69, 0
  %v130 = vsel %vm95, %v70, 0
  %v133 = vsel %vm95, %v71, 0
  %v136 = vsel %vm95, %v72, 0
  %v139 = vsel %vm95, %v73, 0
  %v142 = vsel %vm95, %v74, 0
  %144 = vmatpush.bf16.msra.mxu0 0
  %145 = vmatpush.bf16.msra.mxu0 0
  %146 = vmatpush.bf16.msra.mxu0 0
  %147 = vmatpush.bf16.msra.mxu0 0
  %148 = vmatpush.bf16.msra.mxu0 0
  %149 = vmatpush.bf16.msra.mxu0 0
  %150 = vmatpush.bf16.msra.mxu0 %v92
  %151 = vmatpush.bf16.msra.mxu0 %v91
  %152 = vmatmul.bf16.gmra.mxu0 %v97
  %v153 = vpop.f32.mrf.mxu0
  %v154 = vadd.f32 %v81, %v153
  %v155 = vpop.f32.mrf.mxu0
  %v156 = vadd.f32 %v81, %v155
  %157 = vmatmul.bf16.gmra.mxu0 %v100
  %v158 = vpop.f32.mrf.mxu0
  %v159 = vadd.f32 %v81, %v158
  %v160 = vpop.f32.mrf.mxu0
  %v161 = vadd.f32 %v81, %v160
  %162 = vmatmul.bf16.gmra.mxu0 %v103
  %v163 = vpop.f32.mrf.mxu0
  %v164 = vadd.f32 %v81, %v163
  %v165 = vpop.f32.mrf.mxu0
  %v166 = vadd.f32 %v81, %v165
  %167 = vmatmul.bf16.gmra.mxu0 %v106
  %v168 = vpop.f32.mrf.mxu0
  %v169 = vadd.f32 %v81, %v168
  %v170 = vpop.f32.mrf.mxu0
  %v171 = vadd.f32 %v81, %v170
  %172 = vmatmul.bf16.gmra.mxu0 %v109
  %v173 = vpop.f32.mrf.mxu0
  %v174 = vadd.f32 %v81, %v173
  %v175 = vpop.f32.mrf.mxu0
  %v176 = vadd.f32 %v81, %v175
  %177 = vmatmul.bf16.gmra.mxu0 %v112
  %v178 = vpop.f32.mrf.mxu0
  %v179 = vadd.f32 %v81, %v178
  %v180 = vpop.f32.mrf.mxu0
  %v181 = vadd.f32 %v81, %v180
  %182 = vmatmul.bf16.gmra.mxu0 %v115
  %v183 = vpop.f32.mrf.mxu0
  %v184 = vadd.f32 %v81, %v183
  %v185 = vpop.f32.mrf.mxu0
  %v186 = vadd.f32 %v81, %v185
  %187 = vmatmul.bf16.gmra.mxu0 %v118
  %v188 = vpop.f32.mrf.mxu0
  %v189 = vadd.f32 %v81, %v188
  %v190 = vpop.f32.mrf.mxu0
  %v191 = vadd.f32 %v81, %v190
  %192 = vmatmul.bf16.gmra.mxu0 %v121
  %v193 = vpop.f32.mrf.mxu0
  %v194 = vadd.f32 %v81, %v193
  %v195 = vpop.f32.mrf.mxu0
  %v196 = vadd.f32 %v81, %v195
  %197 = vmatmul.bf16.gmra.mxu0 %v124
  %v198 = vpop.f32.mrf.mxu0
  %v199 = vadd.f32 %v81, %v198
  %v200 = vpop.f32.mrf.mxu0
  %v201 = vadd.f32 %v81, %v200
  %202 = vmatmul.bf16.gmra.mxu0 %v127
  %v203 = vpop.f32.mrf.mxu0
  %v204 = vadd.f32 %v81, %v203
  %v205 = vpop.f32.mrf.mxu0
  %v206 = vadd.f32 %v81, %v205
  %207 = vmatmul.bf16.gmra.mxu0 %v130
  %v208 = vpop.f32.mrf.mxu0
  %v209 = vadd.f32 %v81, %v208
  %v210 = vpop.f32.mrf.mxu0
  %v211 = vadd.f32 %v81, %v210
  %212 = vmatmul.bf16.gmra.mxu0 %v133
  %v213 = vpop.f32.mrf.mxu0
  %v214 = vadd.f32 %v81, %v213
  %v215 = vpop.f32.mrf.mxu0
  %v216 = vadd.f32 %v81, %v215
  %217 = vmatmul.bf16.gmra.mxu0 %v136
  %v218 = vpop.f32.mrf.mxu0
  %v219 = vadd.f32 %v81, %v218
  %v220 = vpop.f32.mrf.mxu0
  %v221 = vadd.f32 %v81, %v220
  %222 = vmatmul.bf16.gmra.mxu0 %v139
  %v223 = vpop.f32.mrf.mxu0
  %v224 = vadd.f32 %v81, %v223
  %v225 = vpop.f32.mrf.mxu0
  %v226 = vadd.f32 %v81, %v225
  %227 = vmatmul.bf16.gmra.mxu0 %v142
  %v228 = vpop.f32.mrf.mxu0
  %v229 = vadd.f32 %v81, %v228
  %v230 = vpop.f32.mrf.mxu0
  %v231 = vadd.f32 %v81, %v230
  %232 = vdwg.mxu0
  %v233 = vmax.f32 %v154, 0.0
  %v234 = vmax.f32 %v156, 0.0
  %v235 = vmax.f32 %v159, 0.0
  %v236 = vmax.f32 %v161, 0.0
  %v237 = vmax.f32 %v164, 0.0
  %v238 = vmax.f32 %v166, 0.0
  %v239 = vmax.f32 %v169, 0.0
  %v240 = vmax.f32 %v171, 0.0
  %v241 = vmax.f32 %v174, 0.0
  %v242 = vmax.f32 %v176, 0.0
  %v243 = vmax.f32 %v179, 0.0
  %v244 = vmax.f32 %v181, 0.0
  %v245 = vmax.f32 %v184, 0.0
  %v246 = vmax.f32 %v186, 0.0
  %v247 = vmax.f32 %v189, 0.0
  %v248 = vmax.f32 %v191, 0.0
  %v249 = vmax.f32 %v194, 0.0
  %v250 = vmax.f32 %v196, 0.0
  %v251 = vmax.f32 %v199, 0.0
  %v252 = vmax.f32 %v201, 0.0
  %v253 = vmax.f32 %v204, 0.0
  %v254 = vmax.f32 %v206, 0.0
  %v255 = vmax.f32 %v209, 0.0
  %v256 = vmax.f32 %v211, 0.0
  %v257 = vmax.f32 %v214, 0.0
  %v258 = vmax.f32 %v216, 0.0
  %v259 = vmax.f32 %v219, 0.0
  %v260 = vmax.f32 %v221, 0.0
  %v261 = vmax.f32 %v224, 0.0
  %v262 = vmax.f32 %v226, 0.0
  %v263 = vmax.f32 %v229, 0.0
  %v264 = vmax.f32 %v231, 0.0
  %v265 = vpack.c.bf16 %v234, %v233
  %v266 = vpack.c.bf16 %v236, %v235
  %v267 = vpack.c.bf16 %v238, %v237
  %v268 = vpack.c.bf16 %v240, %v239
  %v269 = vpack.c.bf16 %v242, %v241
  %v270 = vpack.c.bf16 %v244, %v243
  %v271 = vpack.c.bf16 %v246, %v245
  %v272 = vpack.c.bf16 %v248, %v247
  %v273 = vpack.c.bf16 %v250, %v249
  %v274 = vpack.c.bf16 %v252, %v251
  %v275 = vpack.c.bf16 %v254, %v253
  %v276 = vpack.c.bf16 %v256, %v255
  %v277 = vpack.c.bf16 %v258, %v257
  %v278 = vpack.c.bf16 %v260, %v259
  %v279 = vpack.c.bf16 %v262, %v261
  %v280 = vpack.c.bf16 %v264, %v263
  %v281 = vld [vmem:[%s3] sm:$0xf]
  %v282 = vld [vmem:[%s3 + $0x4] sm:$0xf]
  %v283 = vld [vmem:[%s3 + $0x8] sm:$0xf]
  %v284 = vld [vmem:[%s3 + $0xc] sm:$0xf]
  %v285 = vld [vmem:[%s3 + $0x10] sm:$0xf]
  %v286 = vld [vmem:[%s3 + $0x14] sm:$0xf]
  %v287 = vld [vmem:[%s3 + $0x18] sm:$0xf]
  %v288 = vld [vmem:[%s3 + $0x1c] sm:$0xf]
  %v289 = vld [vmem:[%s3 + $0x20] sm:$0xf]
  %v290 = vld [vmem:[%s3 + $0x24] sm:$0xf]
  %v291 = vld [vmem:[%s3 + $0x28] sm:$0xf]
  %v292 = vld [vmem:[%s3 + $0x2c] sm:$0xf]
  %v293 = vld [vmem:[%s3 + $0x30] sm:$0xf]
  %v294 = vld [vmem:[%s3 + $0x34] sm:$0xf]
  %v295 = vld [vmem:[%s3 + $0x38] sm:$0xf]
  %v296 = vld [vmem:[%s3 + $0x3c] sm:$0xf]
  %v297 = vld [vmem:[%s4] sm:$0x1]
  %v299 = vperm.slane %v297, 0
  %v317 = vunpack.c.l.b16 %v281
  %v318 = vunpack.c.l.b16 %v282
  %v319 = vunpack.c.l.b16 %v283
  %v320 = vunpack.c.l.b16 %v284
  %v321 = vunpack.c.l.b16 %v285
  %v322 = vunpack.c.l.b16 %v286
  %v323 = vunpack.c.l.b16 %v287
  %v324 = vunpack.c.l.b16 %v288
  %v325 = vunpack.c.l.b16 %v289
  %v326 = vunpack.c.l.b16 %v290
  %v327 = vunpack.c.l.b16 %v291
  %v328 = vunpack.c.l.b16 %v292
  %v329 = vunpack.c.l.b16 %v293
  %v330 = vunpack.c.l.b16 %v294
  %v331 = vunpack.c.l.b16 %v295
  %v332 = vunpack.c.l.b16 %v296
  %v333 = vpack.c.b16 %v318, %v317
  %v334 = vpack.c.b16 %v320, %v319
  %v335 = vpack.c.b16 %v322, %v321
  %v336 = vpack.c.b16 %v324, %v323
  %v337 = vpack.c.b16 %v326, %v325
  %v338 = vpack.c.b16 %v328, %v327
  %v339 = vpack.c.b16 %v330, %v329
  %v340 = vpack.c.b16 %v332, %v331
  %349 = vmatpush.bf16.msra.mxu0 %v340
  %350 = vmatpush.bf16.msra.mxu0 %v339
  %351 = vmatpush.bf16.msra.mxu0 %v338
  %352 = vmatpush.bf16.msra.mxu0 %v337
  %353 = vmatpush.bf16.msra.mxu0 %v336
  %354 = vmatpush.bf16.msra.mxu0 %v335
  %355 = vmatpush.bf16.msra.mxu0 %v334
  %356 = vmatpush.bf16.msra.mxu0 %v333
  %357 = vmatmul.bf16.gmra.mxu0 %v265
  %v358 = vpop.f32.mrf.mxu0
  %v359 = vadd.f32 %v299, %v358
  %v360 = vpop.f32.mrf.mxu0
  %v361 = vadd.f32 %v299, %v360
  %362 = vmatmul.bf16.gmra.mxu0 %v266
  %v363 = vpop.f32.mrf.mxu0
  %v364 = vadd.f32 %v299, %v363
  %v365 = vpop.f32.mrf.mxu0
  %v366 = vadd.f32 %v299, %v365
  %367 = vmatmul.bf16.gmra.mxu0 %v267
  %v368 = vpop.f32.mrf.mxu0
  %v369 = vadd.f32 %v299, %v368
  %v370 = vpop.f32.mrf.mxu0
  %v371 = vadd.f32 %v299, %v370
  %372 = vmatmul.bf16.gmra.mxu0 %v268
  %v373 = vpop.f32.mrf.mxu0
  %v374 = vadd.f32 %v299, %v373
  %v375 = vpop.f32.mrf.mxu0
  %v376 = vadd.f32 %v299, %v375
  %377 = vmatmul.bf16.gmra.mxu0 %v269
  %v378 = vpop.f32.mrf.mxu0
  %v379 = vadd.f32 %v299, %v378
  %v380 = vpop.f32.mrf.mxu0
  %v381 = vadd.f32 %v299, %v380
  %382 = vmatmul.bf16.gmra.mxu0 %v270
  %v383 = vpop.f32.mrf.mxu0
  %v384 = vadd.f32 %v299, %v383
  %v385 = vpop.f32.mrf.mxu0
  %v386 = vadd.f32 %v299, %v385
  %387 = vmatmul.bf16.gmra.mxu0 %v271
  %v388 = vpop.f32.mrf.mxu0
  %v389 = vadd.f32 %v299, %v388
  %v390 = vpop.f32.mrf.mxu0
  %v391 = vadd.f32 %v299, %v390
  %392 = vmatmul.bf16.gmra.mxu0 %v272
  %v393 = vpop.f32.mrf.mxu0
  %v394 = vadd.f32 %v299, %v393
  %v395 = vpop.f32.mrf.mxu0
  %v396 = vadd.f32 %v299, %v395
  %397 = vmatmul.bf16.gmra.mxu0 %v273
  %v398 = vpop.f32.mrf.mxu0
  %v399 = vadd.f32 %v299, %v398
  %v400 = vpop.f32.mrf.mxu0
  %v401 = vadd.f32 %v299, %v400
  %402 = vmatmul.bf16.gmra.mxu0 %v274
  %v403 = vpop.f32.mrf.mxu0
  %v404 = vadd.f32 %v299, %v403
  %v405 = vpop.f32.mrf.mxu0
  %v406 = vadd.f32 %v299, %v405
  %407 = vmatmul.bf16.gmra.mxu0 %v275
  %v408 = vpop.f32.mrf.mxu0
  %v409 = vadd.f32 %v299, %v408
  %v410 = vpop.f32.mrf.mxu0
  %v411 = vadd.f32 %v299, %v410
  %412 = vmatmul.bf16.gmra.mxu0 %v276
  %v413 = vpop.f32.mrf.mxu0
  %v414 = vadd.f32 %v299, %v413
  %v415 = vpop.f32.mrf.mxu0
  %v416 = vadd.f32 %v299, %v415
  %417 = vmatmul.bf16.gmra.mxu0 %v277
  %v418 = vpop.f32.mrf.mxu0
  %v419 = vadd.f32 %v299, %v418
  %v420 = vpop.f32.mrf.mxu0
  %v421 = vadd.f32 %v299, %v420
  %422 = vmatmul.bf16.gmra.mxu0 %v278
  %v423 = vpop.f32.mrf.mxu0
  %v424 = vadd.f32 %v299, %v423
  %v425 = vpop.f32.mrf.mxu0
  %v426 = vadd.f32 %v299, %v425
  %427 = vmatmul.bf16.gmra.mxu0 %v279
  %v428 = vpop.f32.mrf.mxu0
  %v429 = vadd.f32 %v299, %v428
  %v430 = vpop.f32.mrf.mxu0
  %v431 = vadd.f32 %v299, %v430
  %432 = vmatmul.bf16.gmra.mxu0 %v280
  %v433 = vpop.f32.mrf.mxu0
  %v434 = vadd.f32 %v299, %v433
  %v435 = vpop.f32.mrf.mxu0
  %v436 = vadd.f32 %v299, %v435
  %437 = vdwg.mxu0
  %v438 = vmax.f32 %v359, 0.0
  %v439 = vmax.f32 %v361, 0.0
  %v440 = vmax.f32 %v364, 0.0
  %v441 = vmax.f32 %v366, 0.0
  %v442 = vmax.f32 %v369, 0.0
  %v443 = vmax.f32 %v371, 0.0
  %v444 = vmax.f32 %v374, 0.0
  %v445 = vmax.f32 %v376, 0.0
  %v446 = vmax.f32 %v379, 0.0
  %v447 = vmax.f32 %v381, 0.0
  %v448 = vmax.f32 %v384, 0.0
  %v449 = vmax.f32 %v386, 0.0
  %v450 = vmax.f32 %v389, 0.0
  %v451 = vmax.f32 %v391, 0.0
  %v452 = vmax.f32 %v394, 0.0
  %v453 = vmax.f32 %v396, 0.0
  %v454 = vmax.f32 %v399, 0.0
  %v455 = vmax.f32 %v401, 0.0
  %v456 = vmax.f32 %v404, 0.0
  %v457 = vmax.f32 %v406, 0.0
  %v458 = vmax.f32 %v409, 0.0
  %v459 = vmax.f32 %v411, 0.0
  %v460 = vmax.f32 %v414, 0.0
  %v461 = vmax.f32 %v416, 0.0
  %v462 = vmax.f32 %v419, 0.0
  %v463 = vmax.f32 %v421, 0.0
  %v464 = vmax.f32 %v424, 0.0
  %v465 = vmax.f32 %v426, 0.0
  %v466 = vmax.f32 %v429, 0.0
  %v467 = vmax.f32 %v431, 0.0
  %v468 = vmax.f32 %v434, 0.0
  %v469 = vmax.f32 %v436, 0.0
  %v470 = vpack.c.bf16 %v439, %v438
  %v471 = vpack.c.bf16 %v441, %v440
  %v472 = vpack.c.bf16 %v443, %v442
  %v473 = vpack.c.bf16 %v445, %v444
  %v474 = vpack.c.bf16 %v447, %v446
  %v475 = vpack.c.bf16 %v449, %v448
  %v476 = vpack.c.bf16 %v451, %v450
  %v477 = vpack.c.bf16 %v453, %v452
  %v478 = vpack.c.bf16 %v455, %v454
  %v479 = vpack.c.bf16 %v457, %v456
  %v480 = vpack.c.bf16 %v459, %v458
  %v481 = vpack.c.bf16 %v461, %v460
  %v482 = vpack.c.bf16 %v463, %v462
  %v483 = vpack.c.bf16 %v465, %v464
  %v484 = vpack.c.bf16 %v467, %v466
  %v485 = vpack.c.bf16 %v469, %v468
  %v486 = vld [vmem:[%s5] sm:$0xf]
  %v487 = vld [vmem:[%s5 + $0x4] sm:$0xf]
  %v488 = vld [vmem:[%s5 + $0x8] sm:$0xf]
  %v489 = vld [vmem:[%s5 + $0xc] sm:$0xf]
  %v490 = vld [vmem:[%s5 + $0x10] sm:$0xf]
  %v491 = vld [vmem:[%s5 + $0x14] sm:$0xf]
  %v492 = vld [vmem:[%s5 + $0x18] sm:$0xf]
  %v493 = vld [vmem:[%s5 + $0x1c] sm:$0xf]
  %v494 = vld [vmem:[%s5 + $0x20] sm:$0xf]
  %v495 = vld [vmem:[%s5 + $0x24] sm:$0xf]
  %v496 = vld [vmem:[%s5 + $0x28] sm:$0xf]
  %v497 = vld [vmem:[%s5 + $0x2c] sm:$0xf]
  %v498 = vld [vmem:[%s5 + $0x30] sm:$0xf]
  %v499 = vld [vmem:[%s5 + $0x34] sm:$0xf]
  %v500 = vld [vmem:[%s5 + $0x38] sm:$0xf]
  %v501 = vld [vmem:[%s5 + $0x3c] sm:$0xf]
  %v502 = vld [vmem:[%s6] sm:$0x1]
  %v504 = vperm.slane %v502, 0
  %v522 = vunpack.c.l.b16 %v486
  %v523 = vunpack.c.l.b16 %v487
  %v524 = vunpack.c.l.b16 %v488
  %v525 = vunpack.c.l.b16 %v489
  %v526 = vunpack.c.l.b16 %v490
  %v527 = vunpack.c.l.b16 %v491
  %v528 = vunpack.c.l.b16 %v492
  %v529 = vunpack.c.l.b16 %v493
  %v530 = vunpack.c.l.b16 %v494
  %v531 = vunpack.c.l.b16 %v495
  %v532 = vunpack.c.l.b16 %v496
  %v533 = vunpack.c.l.b16 %v497
  %v534 = vunpack.c.l.b16 %v498
  %v535 = vunpack.c.l.b16 %v499
  %v536 = vunpack.c.l.b16 %v500
  %v537 = vunpack.c.l.b16 %v501
  %v538 = vpack.c.b16 %v523, %v522
  %v539 = vpack.c.b16 %v525, %v524
  %v540 = vpack.c.b16 %v527, %v526
  %v541 = vpack.c.b16 %v529, %v528
  %v542 = vpack.c.b16 %v531, %v530
  %v543 = vpack.c.b16 %v533, %v532
  %v544 = vpack.c.b16 %v535, %v534
  %v545 = vpack.c.b16 %v537, %v536
  %554 = vmatpush.bf16.msra.mxu0 %v545
  %555 = vmatpush.bf16.msra.mxu0 %v544
  %556 = vmatpush.bf16.msra.mxu0 %v543
  %557 = vmatpush.bf16.msra.mxu0 %v542
  %558 = vmatpush.bf16.msra.mxu0 %v541
  %559 = vmatpush.bf16.msra.mxu0 %v540
  %560 = vmatpush.bf16.msra.mxu0 %v539
  %561 = vmatpush.bf16.msra.mxu0 %v538
  %562 = vmatmul.bf16.gmra.mxu0 %v470
  %v563 = vpop.f32.mrf.mxu0
  %v564 = vadd.f32 %v504, %v563
  %v565 = vpop.f32.mrf.mxu0
  %v566 = vadd.f32 %v504, %v565
  %567 = vmatmul.bf16.gmra.mxu0 %v471
  %v568 = vpop.f32.mrf.mxu0
  %v569 = vadd.f32 %v504, %v568
  %v570 = vpop.f32.mrf.mxu0
  %v571 = vadd.f32 %v504, %v570
  %572 = vmatmul.bf16.gmra.mxu0 %v472
  %v573 = vpop.f32.mrf.mxu0
  %v574 = vadd.f32 %v504, %v573
  %v575 = vpop.f32.mrf.mxu0
  %v576 = vadd.f32 %v504, %v575
  %577 = vmatmul.bf16.gmra.mxu0 %v473
  %v578 = vpop.f32.mrf.mxu0
  %v579 = vadd.f32 %v504, %v578
  %v580 = vpop.f32.mrf.mxu0
  %v581 = vadd.f32 %v504, %v580
  %582 = vmatmul.bf16.gmra.mxu0 %v474
  %v583 = vpop.f32.mrf.mxu0
  %v584 = vadd.f32 %v504, %v583
  %v585 = vpop.f32.mrf.mxu0
  %v586 = vadd.f32 %v504, %v585
  %587 = vmatmul.bf16.gmra.mxu0 %v475
  %v588 = vpop.f32.mrf.mxu0
  %v589 = vadd.f32 %v504, %v588
  %v590 = vpop.f32.mrf.mxu0
  %v591 = vadd.f32 %v504, %v590
  %592 = vmatmul.bf16.gmra.mxu0 %v476
  %v593 = vpop.f32.mrf.mxu0
  %v594 = vadd.f32 %v504, %v593
  %v595 = vpop.f32.mrf.mxu0
  %v596 = vadd.f32 %v504, %v595
  %597 = vmatmul.bf16.gmra.mxu0 %v477
  %v598 = vpop.f32.mrf.mxu0
  %v599 = vadd.f32 %v504, %v598
  %v600 = vpop.f32.mrf.mxu0
  %v601 = vadd.f32 %v504, %v600
  %602 = vmatmul.bf16.gmra.mxu0 %v478
  %v603 = vpop.f32.mrf.mxu0
  %v604 = vadd.f32 %v504, %v603
  %v605 = vpop.f32.mrf.mxu0
  %v606 = vadd.f32 %v504, %v605
  %607 = vmatmul.bf16.gmra.mxu0 %v479
  %v608 = vpop.f32.mrf.mxu0
  %v609 = vadd.f32 %v504, %v608
  %v610 = vpop.f32.mrf.mxu0
  %v611 = vadd.f32 %v504, %v610
  %612 = vmatmul.bf16.gmra.mxu0 %v480
  %v613 = vpop.f32.mrf.mxu0
  %v614 = vadd.f32 %v504, %v613
  %v615 = vpop.f32.mrf.mxu0
  %v616 = vadd.f32 %v504, %v615
  %617 = vmatmul.bf16.gmra.mxu0 %v481
  %v618 = vpop.f32.mrf.mxu0
  %v619 = vadd.f32 %v504, %v618
  %v620 = vpop.f32.mrf.mxu0
  %v621 = vadd.f32 %v504, %v620
  %622 = vmatmul.bf16.gmra.mxu0 %v482
  %v623 = vpop.f32.mrf.mxu0
  %v624 = vadd.f32 %v504, %v623
  %v625 = vpop.f32.mrf.mxu0
  %v626 = vadd.f32 %v504, %v625
  %627 = vmatmul.bf16.gmra.mxu0 %v483
  %v628 = vpop.f32.mrf.mxu0
  %v629 = vadd.f32 %v504, %v628
  %v630 = vpop.f32.mrf.mxu0
  %v631 = vadd.f32 %v504, %v630
  %632 = vmatmul.bf16.gmra.mxu0 %v484
  %v633 = vpop.f32.mrf.mxu0
  %v634 = vadd.f32 %v504, %v633
  %v635 = vpop.f32.mrf.mxu0
  %v636 = vadd.f32 %v504, %v635
  %637 = vmatmul.bf16.gmra.mxu0 %v485
  %v638 = vpop.f32.mrf.mxu0
  %v639 = vadd.f32 %v504, %v638
  %v640 = vpop.f32.mrf.mxu0
  %v641 = vadd.f32 %v504, %v640
  %642 = vdwg.mxu0
  %v643 = vxor.u32 %v564, 2147483648
  %v644 = vxor.u32 %v566, 2147483648
  %v645 = vxor.u32 %v569, 2147483648
  %v646 = vxor.u32 %v571, 2147483648
  %v647 = vxor.u32 %v574, 2147483648
  %v648 = vxor.u32 %v576, 2147483648
  %v649 = vxor.u32 %v579, 2147483648
  %v650 = vxor.u32 %v581, 2147483648
  %v651 = vxor.u32 %v584, 2147483648
  %v652 = vxor.u32 %v586, 2147483648
  %v653 = vxor.u32 %v589, 2147483648
  %v654 = vxor.u32 %v591, 2147483648
  %v655 = vxor.u32 %v594, 2147483648
  %v656 = vxor.u32 %v596, 2147483648
  %v657 = vxor.u32 %v599, 2147483648
  %v658 = vxor.u32 %v601, 2147483648
  %v659 = vxor.u32 %v604, 2147483648
  %v660 = vxor.u32 %v606, 2147483648
  %v661 = vxor.u32 %v609, 2147483648
  %v662 = vxor.u32 %v611, 2147483648
  %v663 = vxor.u32 %v614, 2147483648
  %v664 = vxor.u32 %v616, 2147483648
  %v665 = vxor.u32 %v619, 2147483648
  %v666 = vxor.u32 %v621, 2147483648
  %v667 = vxor.u32 %v624, 2147483648
  %v668 = vxor.u32 %v626, 2147483648
  %v669 = vxor.u32 %v629, 2147483648
  %v670 = vxor.u32 %v631, 2147483648
  %v671 = vxor.u32 %v634, 2147483648
  %v672 = vxor.u32 %v636, 2147483648
  %v673 = vxor.u32 %v639, 2147483648
  %v674 = vxor.u32 %v641, 2147483648
  %v675 = vmul.f32 %v643, 1.442695
  %v676 = vpow.pop %v675
  %v677 = vmul.f32 %v644, 1.442695
  %v678 = vpow.pop %v677
  %v679 = vmul.f32 %v645, 1.442695
  %v680 = vpow.pop %v679
  %v681 = vmul.f32 %v646, 1.442695
  %v682 = vpow.pop %v681
  %v683 = vmul.f32 %v647, 1.442695
  %v684 = vpow.pop %v683
  %v685 = vmul.f32 %v648, 1.442695
  %v686 = vpow.pop %v685
  %v687 = vmul.f32 %v649, 1.442695
  %v688 = vpow.pop %v687
  %v689 = vmul.f32 %v650, 1.442695
  %v690 = vpow.pop %v689
  %v691 = vmul.f32 %v651, 1.442695
  %v692 = vpow.pop %v691
  %v693 = vmul.f32 %v652, 1.442695
  %v694 = vpow.pop %v693
  %v695 = vmul.f32 %v653, 1.442695
  %v696 = vpow.pop %v695
  %v697 = vmul.f32 %v654, 1.442695
  %v698 = vpow.pop %v697
  %v699 = vmul.f32 %v655, 1.442695
  %v700 = vpow.pop %v699
  %v701 = vmul.f32 %v656, 1.442695
  %v702 = vpow.pop %v701
  %v703 = vmul.f32 %v657, 1.442695
  %v704 = vpow.pop %v703
  %v705 = vmul.f32 %v658, 1.442695
  %v706 = vpow.pop %v705
  %v707 = vmul.f32 %v659, 1.442695
  %v708 = vpow.pop %v707
  %v709 = vmul.f32 %v660, 1.442695
  %v710 = vpow.pop %v709
  %v711 = vmul.f32 %v661, 1.442695
  %v712 = vpow.pop %v711
  %v713 = vmul.f32 %v662, 1.442695
  %v714 = vpow.pop %v713
  %v715 = vmul.f32 %v663, 1.442695
  %v716 = vpow.pop %v715
  %v717 = vmul.f32 %v664, 1.442695
  %v718 = vpow.pop %v717
  %v719 = vmul.f32 %v665, 1.442695
  %v720 = vpow.pop %v719
  %v721 = vmul.f32 %v666, 1.442695
  %v722 = vpow.pop %v721
  %v723 = vmul.f32 %v667, 1.442695
  %v724 = vpow.pop %v723
  %v725 = vmul.f32 %v668, 1.442695
  %v726 = vpow.pop %v725
  %v727 = vmul.f32 %v669, 1.442695
  %v728 = vpow.pop %v727
  %v729 = vmul.f32 %v670, 1.442695
  %v730 = vpow.pop %v729
  %v731 = vmul.f32 %v671, 1.442695
  %v732 = vpow.pop %v731
  %v733 = vmul.f32 %v672, 1.442695
  %v734 = vpow.pop %v733
  %v735 = vmul.f32 %v673, 1.442695
  %v736 = vpow.pop %v735
  %v737 = vmul.f32 %v674, 1.442695
  %v738 = vpow.pop %v737
  %v739 = vadd.f32 %v676, 1.0
  %v740 = vadd.f32 %v678, 1.0
  %v741 = vadd.f32 %v680, 1.0
  %v742 = vadd.f32 %v682, 1.0
  %v743 = vadd.f32 %v684, 1.0
  %v744 = vadd.f32 %v686, 1.0
  %v745 = vadd.f32 %v688, 1.0
  %v746 = vadd.f32 %v690, 1.0
  %v747 = vadd.f32 %v692, 1.0
  %v748 = vadd.f32 %v694, 1.0
  %v749 = vadd.f32 %v696, 1.0
  %v750 = vadd.f32 %v698, 1.0
  %v751 = vadd.f32 %v700, 1.0
  %v752 = vadd.f32 %v702, 1.0
  %v753 = vadd.f32 %v704, 1.0
  %v754 = vadd.f32 %v706, 1.0
  %v755 = vadd.f32 %v708, 1.0
  %v756 = vadd.f32 %v710, 1.0
  %v757 = vadd.f32 %v712, 1.0
  %v758 = vadd.f32 %v714, 1.0
  %v759 = vadd.f32 %v716, 1.0
  %v760 = vadd.f32 %v718, 1.0
  %v761 = vadd.f32 %v720, 1.0
  %v762 = vadd.f32 %v722, 1.0
  %v763 = vadd.f32 %v724, 1.0
  %v764 = vadd.f32 %v726, 1.0
  %v765 = vadd.f32 %v728, 1.0
  %v766 = vadd.f32 %v730, 1.0
  %v767 = vadd.f32 %v732, 1.0
  %v768 = vadd.f32 %v734, 1.0
  %v769 = vadd.f32 %v736, 1.0
  %v770 = vadd.f32 %v738, 1.0
  %v771 = vrcp.pop %v739
  %v772 = vmul.f32 %v739, %v771
  %v773 = vsub.f32 1.0, %v772
  %v774 = vmul.f32 %v771, %v773
  %v775 = vadd.f32 %v771, %v774
  %vm776 = vweird.f32 %v739
  %vm777 = vweird.f32 %v771
  %vm778 = vmor %vm776, %vm777
  %v779 = vsel %vm778, %v771, %v775
  %v780 = vand.u32 2147483647, %v739
  %vm781 = vcmp.eq.f32.partialorder %v780, 8.507059e+37
  %v782 = vand.u32 %v739, 2147483648
  %v783 = vor.u32 1.1754944e-38, %v782
  %v784 = vsel %vm781, %v783, %v779
  %v785 = vmul.f32 1.0, %v784
  %v786 = vrcp.pop %v740
  %v787 = vmul.f32 %v740, %v786
  %v788 = vsub.f32 1.0, %v787
  %v789 = vmul.f32 %v786, %v788
  %v790 = vadd.f32 %v786, %v789
  %vm791 = vweird.f32 %v740
  %vm792 = vweird.f32 %v786
  %vm793 = vmor %vm791, %vm792
  %v794 = vsel %vm793, %v786, %v790
  %v795 = vand.u32 2147483647, %v740
  %vm796 = vcmp.eq.f32.partialorder %v795, 8.507059e+37
  %v797 = vand.u32 %v740, 2147483648
  %v798 = vor.u32 1.1754944e-38, %v797
  %v799 = vsel %vm796, %v798, %v794
  %v800 = vmul.f32 1.0, %v799
  %v801 = vrcp.pop %v741
  %v802 = vmul.f32 %v741, %v801
  %v803 = vsub.f32 1.0, %v802
  %v804 = vmul.f32 %v801, %v803
  %v805 = vadd.f32 %v801, %v804
  %vm806 = vweird.f32 %v741
  %vm807 = vweird.f32 %v801
  %vm808 = vmor %vm806, %vm807
  %v809 = vsel %vm808, %v801, %v805
  %v810 = vand.u32 2147483647, %v741
  %vm811 = vcmp.eq.f32.partialorder %v810, 8.507059e+37
  %v812 = vand.u32 %v741, 2147483648
  %v813 = vor.u32 1.1754944e-38, %v812
  %v814 = vsel %vm811, %v813, %v809
  %v815 = vmul.f32 1.0, %v814
  %v816 = vrcp.pop %v742
  %v817 = vmul.f32 %v742, %v816
  %v818 = vsub.f32 1.0, %v817
  %v819 = vmul.f32 %v816, %v818
  %v820 = vadd.f32 %v816, %v819
  %vm821 = vweird.f32 %v742
  %vm822 = vweird.f32 %v816
  %vm823 = vmor %vm821, %vm822
  %v824 = vsel %vm823, %v816, %v820
  %v825 = vand.u32 2147483647, %v742
  %vm826 = vcmp.eq.f32.partialorder %v825, 8.507059e+37
  %v827 = vand.u32 %v742, 2147483648
  %v828 = vor.u32 1.1754944e-38, %v827
  %v829 = vsel %vm826, %v828, %v824
  %v830 = vmul.f32 1.0, %v829
  %v831 = vrcp.pop %v743
  %v832 = vmul.f32 %v743, %v831
  %v833 = vsub.f32 1.0, %v832
  %v834 = vmul.f32 %v831, %v833
  %v835 = vadd.f32 %v831, %v834
  %vm836 = vweird.f32 %v743
  %vm837 = vweird.f32 %v831
  %vm838 = vmor %vm836, %vm837
  %v839 = vsel %vm838, %v831, %v835
  %v840 = vand.u32 2147483647, %v743
  %vm841 = vcmp.eq.f32.partialorder %v840, 8.507059e+37
  %v842 = vand.u32 %v743, 2147483648
  %v843 = vor.u32 1.1754944e-38, %v842
  %v844 = vsel %vm841, %v843, %v839
  %v845 = vmul.f32 1.0, %v844
  %v846 = vrcp.pop %v744
  %v847 = vmul.f32 %v744, %v846
  %v848 = vsub.f32 1.0, %v847
  %v849 = vmul.f32 %v846, %v848
  %v850 = vadd.f32 %v846, %v849
  %vm851 = vweird.f32 %v744
  %vm852 = vweird.f32 %v846
  %vm853 = vmor %vm851, %vm852
  %v854 = vsel %vm853, %v846, %v850
  %v855 = vand.u32 2147483647, %v744
  %vm856 = vcmp.eq.f32.partialorder %v855, 8.507059e+37
  %v857 = vand.u32 %v744, 2147483648
  %v858 = vor.u32 1.1754944e-38, %v857
  %v859 = vsel %vm856, %v858, %v854
  %v860 = vmul.f32 1.0, %v859
  %v861 = vrcp.pop %v745
  %v862 = vmul.f32 %v745, %v861
  %v863 = vsub.f32 1.0, %v862
  %v864 = vmul.f32 %v861, %v863
  %v865 = vadd.f32 %v861, %v864
  %vm866 = vweird.f32 %v745
  %vm867 = vweird.f32 %v861
  %vm868 = vmor %vm866, %vm867
  %v869 = vsel %vm868, %v861, %v865
  %v870 = vand.u32 2147483647, %v745
  %vm871 = vcmp.eq.f32.partialorder %v870, 8.507059e+37
  %v872 = vand.u32 %v745, 2147483648
  %v873 = vor.u32 1.1754944e-38, %v872
  %v874 = vsel %vm871, %v873, %v869
  %v875 = vmul.f32 1.0, %v874
  %v876 = vrcp.pop %v746
  %v877 = vmul.f32 %v746, %v876
  %v878 = vsub.f32 1.0, %v877
  %v879 = vmul.f32 %v876, %v878
  %v880 = vadd.f32 %v876, %v879
  %vm881 = vweird.f32 %v746
  %vm882 = vweird.f32 %v876
  %vm883 = vmor %vm881, %vm882
  %v884 = vsel %vm883, %v876, %v880
  %v885 = vand.u32 2147483647, %v746
  %vm886 = vcmp.eq.f32.partialorder %v885, 8.507059e+37
  %v887 = vand.u32 %v746, 2147483648
  %v888 = vor.u32 1.1754944e-38, %v887
  %v889 = vsel %vm886, %v888, %v884
  %v890 = vmul.f32 1.0, %v889
  %v891 = vrcp.pop %v747
  %v892 = vmul.f32 %v747, %v891
  %v893 = vsub.f32 1.0, %v892
  %v894 = vmul.f32 %v891, %v893
  %v895 = vadd.f32 %v891, %v894
  %vm896 = vweird.f32 %v747
  %vm897 = vweird.f32 %v891
  %vm898 = vmor %vm896, %vm897
  %v899 = vsel %vm898, %v891, %v895
  %v900 = vand.u32 2147483647, %v747
  %vm901 = vcmp.eq.f32.partialorder %v900, 8.507059e+37
  %v902 = vand.u32 %v747, 2147483648
  %v903 = vor.u32 1.1754944e-38, %v902
  %v904 = vsel %vm901, %v903, %v899
  %v905 = vmul.f32 1.0, %v904
  %v906 = vrcp.pop %v748
  %v907 = vmul.f32 %v748, %v906
  %v908 = vsub.f32 1.0, %v907
  %v909 = vmul.f32 %v906, %v908
  %v910 = vadd.f32 %v906, %v909
  %vm911 = vweird.f32 %v748
  %vm912 = vweird.f32 %v906
  %vm913 = vmor %vm911, %vm912
  %v914 = vsel %vm913, %v906, %v910
  %v915 = vand.u32 2147483647, %v748
  %vm916 = vcmp.eq.f32.partialorder %v915, 8.507059e+37
  %v917 = vand.u32 %v748, 2147483648
  %v918 = vor.u32 1.1754944e-38, %v917
  %v919 = vsel %vm916, %v918, %v914
  %v920 = vmul.f32 1.0, %v919
  %v921 = vrcp.pop %v749
  %v922 = vmul.f32 %v749, %v921
  %v923 = vsub.f32 1.0, %v922
  %v924 = vmul.f32 %v921, %v923
  %v925 = vadd.f32 %v921, %v924
  %vm926 = vweird.f32 %v749
  %vm927 = vweird.f32 %v921
  %vm928 = vmor %vm926, %vm927
  %v929 = vsel %vm928, %v921, %v925
  %v930 = vand.u32 2147483647, %v749
  %vm931 = vcmp.eq.f32.partialorder %v930, 8.507059e+37
  %v932 = vand.u32 %v749, 2147483648
  %v933 = vor.u32 1.1754944e-38, %v932
  %v934 = vsel %vm931, %v933, %v929
  %v935 = vmul.f32 1.0, %v934
  %v936 = vrcp.pop %v750
  %v937 = vmul.f32 %v750, %v936
  %v938 = vsub.f32 1.0, %v937
  %v939 = vmul.f32 %v936, %v938
  %v940 = vadd.f32 %v936, %v939
  %vm941 = vweird.f32 %v750
  %vm942 = vweird.f32 %v936
  %vm943 = vmor %vm941, %vm942
  %v944 = vsel %vm943, %v936, %v940
  %v945 = vand.u32 2147483647, %v750
  %vm946 = vcmp.eq.f32.partialorder %v945, 8.507059e+37
  %v947 = vand.u32 %v750, 2147483648
  %v948 = vor.u32 1.1754944e-38, %v947
  %v949 = vsel %vm946, %v948, %v944
  %v950 = vmul.f32 1.0, %v949
  %v951 = vrcp.pop %v751
  %v952 = vmul.f32 %v751, %v951
  %v953 = vsub.f32 1.0, %v952
  %v954 = vmul.f32 %v951, %v953
  %v955 = vadd.f32 %v951, %v954
  %vm956 = vweird.f32 %v751
  %vm957 = vweird.f32 %v951
  %vm958 = vmor %vm956, %vm957
  %v959 = vsel %vm958, %v951, %v955
  %v960 = vand.u32 2147483647, %v751
  %vm961 = vcmp.eq.f32.partialorder %v960, 8.507059e+37
  %v962 = vand.u32 %v751, 2147483648
  %v963 = vor.u32 1.1754944e-38, %v962
  %v964 = vsel %vm961, %v963, %v959
  %v965 = vmul.f32 1.0, %v964
  %v966 = vrcp.pop %v752
  %v967 = vmul.f32 %v752, %v966
  %v968 = vsub.f32 1.0, %v967
  %v969 = vmul.f32 %v966, %v968
  %v970 = vadd.f32 %v966, %v969
  %vm971 = vweird.f32 %v752
  %vm972 = vweird.f32 %v966
  %vm973 = vmor %vm971, %vm972
  %v974 = vsel %vm973, %v966, %v970
  %v975 = vand.u32 2147483647, %v752
  %vm976 = vcmp.eq.f32.partialorder %v975, 8.507059e+37
  %v977 = vand.u32 %v752, 2147483648
  %v978 = vor.u32 1.1754944e-38, %v977
  %v979 = vsel %vm976, %v978, %v974
  %v980 = vmul.f32 1.0, %v979
  %v981 = vrcp.pop %v753
  %v982 = vmul.f32 %v753, %v981
  %v983 = vsub.f32 1.0, %v982
  %v984 = vmul.f32 %v981, %v983
  %v985 = vadd.f32 %v981, %v984
  %vm986 = vweird.f32 %v753
  %vm987 = vweird.f32 %v981
  %vm988 = vmor %vm986, %vm987
  %v989 = vsel %vm988, %v981, %v985
  %v990 = vand.u32 2147483647, %v753
  %vm991 = vcmp.eq.f32.partialorder %v990, 8.507059e+37
  %v992 = vand.u32 %v753, 2147483648
  %v993 = vor.u32 1.1754944e-38, %v992
  %v994 = vsel %vm991, %v993, %v989
  %v995 = vmul.f32 1.0, %v994
  %v996 = vrcp.pop %v754
  %v997 = vmul.f32 %v754, %v996
  %v998 = vsub.f32 1.0, %v997
  %v999 = vmul.f32 %v996, %v998
  %v1000 = vadd.f32 %v996, %v999
  %vm1001 = vweird.f32 %v754
  %vm1002 = vweird.f32 %v996
  %vm1003 = vmor %vm1001, %vm1002
  %v1004 = vsel %vm1003, %v996, %v1000
  %v1005 = vand.u32 2147483647, %v754
  %vm1006 = vcmp.eq.f32.partialorder %v1005, 8.507059e+37
  %v1007 = vand.u32 %v754, 2147483648
  %v1008 = vor.u32 1.1754944e-38, %v1007
  %v1009 = vsel %vm1006, %v1008, %v1004
  %v1010 = vmul.f32 1.0, %v1009
  %v1011 = vrcp.pop %v755
  %v1012 = vmul.f32 %v755, %v1011
  %v1013 = vsub.f32 1.0, %v1012
  %v1014 = vmul.f32 %v1011, %v1013
  %v1015 = vadd.f32 %v1011, %v1014
  %vm1016 = vweird.f32 %v755
  %vm1017 = vweird.f32 %v1011
  %vm1018 = vmor %vm1016, %vm1017
  %v1019 = vsel %vm1018, %v1011, %v1015
  %v1020 = vand.u32 2147483647, %v755
  %vm1021 = vcmp.eq.f32.partialorder %v1020, 8.507059e+37
  %v1022 = vand.u32 %v755, 2147483648
  %v1023 = vor.u32 1.1754944e-38, %v1022
  %v1024 = vsel %vm1021, %v1023, %v1019
  %v1025 = vmul.f32 1.0, %v1024
  %v1026 = vrcp.pop %v756
  %v1027 = vmul.f32 %v756, %v1026
  %v1028 = vsub.f32 1.0, %v1027
  %v1029 = vmul.f32 %v1026, %v1028
  %v1030 = vadd.f32 %v1026, %v1029
  %vm1031 = vweird.f32 %v756
  %vm1032 = vweird.f32 %v1026
  %vm1033 = vmor %vm1031, %vm1032
  %v1034 = vsel %vm1033, %v1026, %v1030
  %v1035 = vand.u32 2147483647, %v756
  %vm1036 = vcmp.eq.f32.partialorder %v1035, 8.507059e+37
  %v1037 = vand.u32 %v756, 2147483648
  %v1038 = vor.u32 1.1754944e-38, %v1037
  %v1039 = vsel %vm1036, %v1038, %v1034
  %v1040 = vmul.f32 1.0, %v1039
  %v1041 = vrcp.pop %v757
  %v1042 = vmul.f32 %v757, %v1041
  %v1043 = vsub.f32 1.0, %v1042
  %v1044 = vmul.f32 %v1041, %v1043
  %v1045 = vadd.f32 %v1041, %v1044
  %vm1046 = vweird.f32 %v757
  %vm1047 = vweird.f32 %v1041
  %vm1048 = vmor %vm1046, %vm1047
  %v1049 = vsel %vm1048, %v1041, %v1045
  %v1050 = vand.u32 2147483647, %v757
  %vm1051 = vcmp.eq.f32.partialorder %v1050, 8.507059e+37
  %v1052 = vand.u32 %v757, 2147483648
  %v1053 = vor.u32 1.1754944e-38, %v1052
  %v1054 = vsel %vm1051, %v1053, %v1049
  %v1055 = vmul.f32 1.0, %v1054
  %v1056 = vrcp.pop %v758
  %v1057 = vmul.f32 %v758, %v1056
  %v1058 = vsub.f32 1.0, %v1057
  %v1059 = vmul.f32 %v1056, %v1058
  %v1060 = vadd.f32 %v1056, %v1059
  %vm1061 = vweird.f32 %v758
  %vm1062 = vweird.f32 %v1056
  %vm1063 = vmor %vm1061, %vm1062
  %v1064 = vsel %vm1063, %v1056, %v1060
  %v1065 = vand.u32 2147483647, %v758
  %vm1066 = vcmp.eq.f32.partialorder %v1065, 8.507059e+37
  %v1067 = vand.u32 %v758, 2147483648
  %v1068 = vor.u32 1.1754944e-38, %v1067
  %v1069 = vsel %vm1066, %v1068, %v1064
  %v1070 = vmul.f32 1.0, %v1069
  %v1071 = vrcp.pop %v759
  %v1072 = vmul.f32 %v759, %v1071
  %v1073 = vsub.f32 1.0, %v1072
  %v1074 = vmul.f32 %v1071, %v1073
  %v1075 = vadd.f32 %v1071, %v1074
  %vm1076 = vweird.f32 %v759
  %vm1077 = vweird.f32 %v1071
  %vm1078 = vmor %vm1076, %vm1077
  %v1079 = vsel %vm1078, %v1071, %v1075
  %v1080 = vand.u32 2147483647, %v759
  %vm1081 = vcmp.eq.f32.partialorder %v1080, 8.507059e+37
  %v1082 = vand.u32 %v759, 2147483648
  %v1083 = vor.u32 1.1754944e-38, %v1082
  %v1084 = vsel %vm1081, %v1083, %v1079
  %v1085 = vmul.f32 1.0, %v1084
  %v1086 = vrcp.pop %v760
  %v1087 = vmul.f32 %v760, %v1086
  %v1088 = vsub.f32 1.0, %v1087
  %v1089 = vmul.f32 %v1086, %v1088
  %v1090 = vadd.f32 %v1086, %v1089
  %vm1091 = vweird.f32 %v760
  %vm1092 = vweird.f32 %v1086
  %vm1093 = vmor %vm1091, %vm1092
  %v1094 = vsel %vm1093, %v1086, %v1090
  %v1095 = vand.u32 2147483647, %v760
  %vm1096 = vcmp.eq.f32.partialorder %v1095, 8.507059e+37
  %v1097 = vand.u32 %v760, 2147483648
  %v1098 = vor.u32 1.1754944e-38, %v1097
  %v1099 = vsel %vm1096, %v1098, %v1094
  %v1100 = vmul.f32 1.0, %v1099
  %v1101 = vrcp.pop %v761
  %v1102 = vmul.f32 %v761, %v1101
  %v1103 = vsub.f32 1.0, %v1102
  %v1104 = vmul.f32 %v1101, %v1103
  %v1105 = vadd.f32 %v1101, %v1104
  %vm1106 = vweird.f32 %v761
  %vm1107 = vweird.f32 %v1101
  %vm1108 = vmor %vm1106, %vm1107
  %v1109 = vsel %vm1108, %v1101, %v1105
  %v1110 = vand.u32 2147483647, %v761
  %vm1111 = vcmp.eq.f32.partialorder %v1110, 8.507059e+37
  %v1112 = vand.u32 %v761, 2147483648
  %v1113 = vor.u32 1.1754944e-38, %v1112
  %v1114 = vsel %vm1111, %v1113, %v1109
  %v1115 = vmul.f32 1.0, %v1114
  %v1116 = vrcp.pop %v762
  %v1117 = vmul.f32 %v762, %v1116
  %v1118 = vsub.f32 1.0, %v1117
  %v1119 = vmul.f32 %v1116, %v1118
  %v1120 = vadd.f32 %v1116, %v1119
  %vm1121 = vweird.f32 %v762
  %vm1122 = vweird.f32 %v1116
  %vm1123 = vmor %vm1121, %vm1122
  %v1124 = vsel %vm1123, %v1116, %v1120
  %v1125 = vand.u32 2147483647, %v762
  %vm1126 = vcmp.eq.f32.partialorder %v1125, 8.507059e+37
  %v1127 = vand.u32 %v762, 2147483648
  %v1128 = vor.u32 1.1754944e-38, %v1127
  %v1129 = vsel %vm1126, %v1128, %v1124
  %v1130 = vmul.f32 1.0, %v1129
  %v1131 = vrcp.pop %v763
  %v1132 = vmul.f32 %v763, %v1131
  %v1133 = vsub.f32 1.0, %v1132
  %v1134 = vmul.f32 %v1131, %v1133
  %v1135 = vadd.f32 %v1131, %v1134
  %vm1136 = vweird.f32 %v763
  %vm1137 = vweird.f32 %v1131
  %vm1138 = vmor %vm1136, %vm1137
  %v1139 = vsel %vm1138, %v1131, %v1135
  %v1140 = vand.u32 2147483647, %v763
  %vm1141 = vcmp.eq.f32.partialorder %v1140, 8.507059e+37
  %v1142 = vand.u32 %v763, 2147483648
  %v1143 = vor.u32 1.1754944e-38, %v1142
  %v1144 = vsel %vm1141, %v1143, %v1139
  %v1145 = vmul.f32 1.0, %v1144
  %v1146 = vrcp.pop %v764
  %v1147 = vmul.f32 %v764, %v1146
  %v1148 = vsub.f32 1.0, %v1147
  %v1149 = vmul.f32 %v1146, %v1148
  %v1150 = vadd.f32 %v1146, %v1149
  %vm1151 = vweird.f32 %v764
  %vm1152 = vweird.f32 %v1146
  %vm1153 = vmor %vm1151, %vm1152
  %v1154 = vsel %vm1153, %v1146, %v1150
  %v1155 = vand.u32 2147483647, %v764
  %vm1156 = vcmp.eq.f32.partialorder %v1155, 8.507059e+37
  %v1157 = vand.u32 %v764, 2147483648
  %v1158 = vor.u32 1.1754944e-38, %v1157
  %v1159 = vsel %vm1156, %v1158, %v1154
  %v1160 = vmul.f32 1.0, %v1159
  %v1161 = vrcp.pop %v765
  %v1162 = vmul.f32 %v765, %v1161
  %v1163 = vsub.f32 1.0, %v1162
  %v1164 = vmul.f32 %v1161, %v1163
  %v1165 = vadd.f32 %v1161, %v1164
  %vm1166 = vweird.f32 %v765
  %vm1167 = vweird.f32 %v1161
  %vm1168 = vmor %vm1166, %vm1167
  %v1169 = vsel %vm1168, %v1161, %v1165
  %v1170 = vand.u32 2147483647, %v765
  %vm1171 = vcmp.eq.f32.partialorder %v1170, 8.507059e+37
  %v1172 = vand.u32 %v765, 2147483648
  %v1173 = vor.u32 1.1754944e-38, %v1172
  %v1174 = vsel %vm1171, %v1173, %v1169
  %v1175 = vmul.f32 1.0, %v1174
  %v1176 = vrcp.pop %v766
  %v1177 = vmul.f32 %v766, %v1176
  %v1178 = vsub.f32 1.0, %v1177
  %v1179 = vmul.f32 %v1176, %v1178
  %v1180 = vadd.f32 %v1176, %v1179
  %vm1181 = vweird.f32 %v766
  %vm1182 = vweird.f32 %v1176
  %vm1183 = vmor %vm1181, %vm1182
  %v1184 = vsel %vm1183, %v1176, %v1180
  %v1185 = vand.u32 2147483647, %v766
  %vm1186 = vcmp.eq.f32.partialorder %v1185, 8.507059e+37
  %v1187 = vand.u32 %v766, 2147483648
  %v1188 = vor.u32 1.1754944e-38, %v1187
  %v1189 = vsel %vm1186, %v1188, %v1184
  %v1190 = vmul.f32 1.0, %v1189
  %v1191 = vrcp.pop %v767
  %v1192 = vmul.f32 %v767, %v1191
  %v1193 = vsub.f32 1.0, %v1192
  %v1194 = vmul.f32 %v1191, %v1193
  %v1195 = vadd.f32 %v1191, %v1194
  %vm1196 = vweird.f32 %v767
  %vm1197 = vweird.f32 %v1191
  %vm1198 = vmor %vm1196, %vm1197
  %v1199 = vsel %vm1198, %v1191, %v1195
  %v1200 = vand.u32 2147483647, %v767
  %vm1201 = vcmp.eq.f32.partialorder %v1200, 8.507059e+37
  %v1202 = vand.u32 %v767, 2147483648
  %v1203 = vor.u32 1.1754944e-38, %v1202
  %v1204 = vsel %vm1201, %v1203, %v1199
  %v1205 = vmul.f32 1.0, %v1204
  %v1206 = vrcp.pop %v768
  %v1207 = vmul.f32 %v768, %v1206
  %v1208 = vsub.f32 1.0, %v1207
  %v1209 = vmul.f32 %v1206, %v1208
  %v1210 = vadd.f32 %v1206, %v1209
  %vm1211 = vweird.f32 %v768
  %vm1212 = vweird.f32 %v1206
  %vm1213 = vmor %vm1211, %vm1212
  %v1214 = vsel %vm1213, %v1206, %v1210
  %v1215 = vand.u32 2147483647, %v768
  %vm1216 = vcmp.eq.f32.partialorder %v1215, 8.507059e+37
  %v1217 = vand.u32 %v768, 2147483648
  %v1218 = vor.u32 1.1754944e-38, %v1217
  %v1219 = vsel %vm1216, %v1218, %v1214
  %v1220 = vmul.f32 1.0, %v1219
  %v1221 = vrcp.pop %v769
  %v1222 = vmul.f32 %v769, %v1221
  %v1223 = vsub.f32 1.0, %v1222
  %v1224 = vmul.f32 %v1221, %v1223
  %v1225 = vadd.f32 %v1221, %v1224
  %vm1226 = vweird.f32 %v769
  %vm1227 = vweird.f32 %v1221
  %vm1228 = vmor %vm1226, %vm1227
  %v1229 = vsel %vm1228, %v1221, %v1225
  %v1230 = vand.u32 2147483647, %v769
  %vm1231 = vcmp.eq.f32.partialorder %v1230, 8.507059e+37
  %v1232 = vand.u32 %v769, 2147483648
  %v1233 = vor.u32 1.1754944e-38, %v1232
  %v1234 = vsel %vm1231, %v1233, %v1229
  %v1235 = vmul.f32 1.0, %v1234
  %v1236 = vrcp.pop %v770
  %v1237 = vmul.f32 %v770, %v1236
  %v1238 = vsub.f32 1.0, %v1237
  %v1239 = vmul.f32 %v1236, %v1238
  %v1240 = vadd.f32 %v1236, %v1239
  %vm1241 = vweird.f32 %v770
  %vm1242 = vweird.f32 %v1236
  %vm1243 = vmor %vm1241, %vm1242
  %v1244 = vsel %vm1243, %v1236, %v1240
  %v1245 = vand.u32 2147483647, %v770
  %vm1246 = vcmp.eq.f32.partialorder %v1245, 8.507059e+37
  %v1247 = vand.u32 %v770, 2147483648
  %v1248 = vor.u32 1.1754944e-38, %v1247
  %v1249 = vsel %vm1246, %v1248, %v1244
  %v1250 = vmul.f32 1.0, %v1249
  %vm1251 = vcmask 64512
  %1252 = vst.msk [vmem:[%s7] sm:$0xff] %vm1251, %v785
  %1253 = vst.msk [vmem:[%s7 + $0x8] sm:$0xff] %vm1251, %v800
  %1254 = vst.msk [vmem:[%s7 + $0x10] sm:$0xff] %vm1251, %v815
  %1255 = vst.msk [vmem:[%s7 + $0x18] sm:$0xff] %vm1251, %v830
  %1256 = vst.msk [vmem:[%s7 + $0x20] sm:$0xff] %vm1251, %v845
  %1257 = vst.msk [vmem:[%s7 + $0x28] sm:$0xff] %vm1251, %v860
  %1258 = vst.msk [vmem:[%s7 + $0x30] sm:$0xff] %vm1251, %v875
  %1259 = vst.msk [vmem:[%s7 + $0x38] sm:$0xff] %vm1251, %v890
  %1260 = vst.msk [vmem:[%s7 + $0x40] sm:$0xff] %vm1251, %v905
  %1261 = vst.msk [vmem:[%s7 + $0x48] sm:$0xff] %vm1251, %v920
  %1262 = vst.msk [vmem:[%s7 + $0x50] sm:$0xff] %vm1251, %v935
  %1263 = vst.msk [vmem:[%s7 + $0x58] sm:$0xff] %vm1251, %v950
  %1264 = vst.msk [vmem:[%s7 + $0x60] sm:$0xff] %vm1251, %v965
  %1265 = vst.msk [vmem:[%s7 + $0x68] sm:$0xff] %vm1251, %v980
  %1266 = vst.msk [vmem:[%s7 + $0x70] sm:$0xff] %vm1251, %v995
  %1267 = vst.msk [vmem:[%s7 + $0x78] sm:$0xff] %vm1251, %v1010
  %1268 = vst.msk [vmem:[%s7 + $0x80] sm:$0xff] %vm1251, %v1025
  %1269 = vst.msk [vmem:[%s7 + $0x88] sm:$0xff] %vm1251, %v1040
  %1270 = vst.msk [vmem:[%s7 + $0x90] sm:$0xff] %vm1251, %v1055
  %1271 = vst.msk [vmem:[%s7 + $0x98] sm:$0xff] %vm1251, %v1070
  %1272 = vst.msk [vmem:[%s7 + $0xa0] sm:$0xff] %vm1251, %v1085
  %1273 = vst.msk [vmem:[%s7 + $0xa8] sm:$0xff] %vm1251, %v1100
  %1274 = vst.msk [vmem:[%s7 + $0xb0] sm:$0xff] %vm1251, %v1115
  %1275 = vst.msk [vmem:[%s7 + $0xb8] sm:$0xff] %vm1251, %v1130
  %1276 = vst.msk [vmem:[%s7 + $0xc0] sm:$0xff] %vm1251, %v1145
  %1277 = vst.msk [vmem:[%s7 + $0xc8] sm:$0xff] %vm1251, %v1160
  %1278 = vst.msk [vmem:[%s7 + $0xd0] sm:$0xff] %vm1251, %v1175
  %1279 = vst.msk [vmem:[%s7 + $0xd8] sm:$0xff] %vm1251, %v1190
  %1280 = vst.msk [vmem:[%s7 + $0xe0] sm:$0xff] %vm1251, %v1205
  %1281 = vst.msk [vmem:[%s7 + $0xe8] sm:$0xff] %vm1251, %v1220
  %1282 = vst.msk [vmem:[%s7 + $0xf0] sm:$0xff] %vm1251, %v1235
  %1283 = vst.msk [vmem:[%s7 + $0xf8] sm:$0xff] %vm1251, %v1250
  // Predicated region
  $region30: #{tpu_custom_call.1} parent=0 // pred_check
    _
  $region31: #{tpu_custom_call.1} parent=0 // pred_check_branch
    %1285 = sbr.rel (0) target = $region33
  $region32: #{tpu_custom_call.1} parent=0 // pred_region
    _
  $region33: #{tpu_custom_call.1} parent=0 // pred_fallthru
    _
  // Predicated region
  $region34: #{tpu_custom_call.1} parent=0 // pred_check
    _
  $region35: #{tpu_custom_call.1} parent=0 // pred_check_branch
    %1287 = sbr.rel (0) target = $region37
  $region36: #{tpu_custom_call.1} parent=0 // pred_region
    _
  $region37: #{tpu_custom_call.1} parent=0 // pred_fallthru
    _

</llo_original>
